<compile_context>
chip_gen: v7x
topology: tpu7x:2x2x1
jax: 0.10.0
libtpu: 0.0.40
codegen_flags: <defaults>
</compile_context>

<pallas_src>
import functools

import jax
import jax.numpy as jnp
from jax import lax
from jax.experimental import pallas as pl
from jax.experimental.pallas import tpu as pltpu


def _conf_loss_kernel(base_ref, off_ref, f_ref, tmap_ref, tflat_ref, out_ref,
                      *, H, W, eps):
    # base_ref : (2, N) f32   row 0 = pixel column index, row 1 = pixel row index
    # off_ref  : (2, N) f32   row 0 = x offset, row 1 = y offset (normalized, as in torch)
    # f_ref    : (1, N) f32   confidence values
    # tmap_ref : (H, W) bf16  masked label image (full image; constant across row-blocks)
    # tflat_ref: (1, N) bf16  masked labels of this row-block (lane-dense view of tmap)
    # out_ref  : (1,1,1,1) f32 per-(batch, row-block) partial loss sum
    N = f_ref.shape[-1]

    col = base_ref[pl.ds(0, 1), :]                                   # (1, N)
    row = base_ref[pl.ds(1, 1), :]                                   # (1, N)
    ox = off_ref[pl.ds(0, 1), :]                                     # (1, N)
    oy = off_ref[pl.ds(1, 1), :]                                     # (1, N)

    # grid_sample nearest / border / align_corners=True collapses to:
    #   px = clip(col + ox*(W-1)/2, 0, W-1);  py = clip(row + oy*(H-1)/2, 0, H-1)
    px = jnp.clip(col + ox * ((W - 1) * 0.5), 0.0, float(W - 1))
    py = jnp.clip(row + oy * ((H - 1) * 0.5), 0.0, float(H - 1))
    # TODO(synk): jnp.round is round-half-to-even; PyTorch nearest grid_sample may pick the
    #             other neighbor at exact .5 sample points.
    xi = jnp.round(px).astype(jnp.int32)                             # (1, N)
    yi = jnp.round(py).astype(jnp.int32)                             # (1, N)

    # Gather H_s[l] = tmap[yi[l], xi[l]] with ONE wide bf16 MXU matmul:
    #   onehot[w, l] = (w == xi[l]);  G = tmap @ onehot;  G[h, l] = tmap[h, xi[l]]
    ww = lax.broadcasted_iota(jnp.int32, (W, N), 0)
    onehot = (ww == xi).astype(jnp.float32).astype(jnp.bfloat16)      # (W, N) bf16
    G = jnp.dot(tmap_ref[...], onehot,
                preferred_element_type=jnp.float32)                   # (H, N) f32
    hh = lax.broadcasted_iota(jnp.int32, (H, N), 0)
    hs = jnp.sum(jnp.where(hh == yi, G, 0.0),
                 axis=0, keepdims=True)                               # (1, N) f32

    # Confidence loss (f32 epilogue, single fused EUP log per pixel).
    tloc = tflat_ref[...].astype(jnp.float32)                         # (1, N)
    fval = f_ref[...]                                                 # (1, N)
    match = tloc == hs
    loss = -jnp.log(jnp.where(match, fval, 1.0 - fval) + eps)         # (1, N)
    out_ref[...] = jnp.zeros_like(out_ref) + jnp.sum(loss)


def _pick_block_rows(H, W):
    """Rows per grid step.  The flattened lane width N = TQ*W must be a multiple of 128
    (or the whole image), targeting N in [256, 1024] to fill the 256-wide v6e/v7x MXU
    without blowing v7x's 64 MiB VMEM."""
    cands = [t for t in range(1, H + 1)
             if H % t == 0 and ((t * W) % 128 == 0 or t == H)]

    def score(t):
        n = t * W
        if n < 256:
            return (2, 256 - n)
        if n > 1024:
            return (1, n - 1024)
        return (0, abs(n - 512))

    return min(cands, key=score)


def confidence_loss_pallas(offset, f, target, *, ignore_label=-1, eps=1e-7):
    """offset: (B,2,H,W) f32 (normalized offsets), f: (B,1,H,W) f32, target: (B,H,W) int."""
    B, _, H, W = f.shape
    assert offset.shape == (B, 2, H, W)
    assert target.shape == (B, H, W), "upsample branch not supported; sizes must match"
    assert H > 1 and W > 1, "degenerate spatial dims (H==1 or W==1) not supported"

    TQ = _pick_block_rows(H, W)
    nrb = H // TQ
    N = TQ * W

    # Lane-dense reshapes (contiguous dim merges -> free).  Masked bf16 target built once
    # in the wrapper: removes int32 HBM traffic, the f32 VMEM scratch and the i==0 init.
    off_flat = offset.astype(jnp.float32).reshape(B, 2, H * W)
    f_flat = f.astype(jnp.float32).reshape(B, 1, H * W)
    # NOTE: bf16 label values are exact only for |label| <= 256; larger class ids could
    #       collide after the cast (f32 accumulation keeps the gather itself exact).
    tmap = jnp.where(target == ignore_label, 0, target).astype(jnp.bfloat16)   # (B, H, W)
    tflat = tmap.reshape(B, 1, H * W)
    # Pixel-index grid (mirrors get_coords, in pixel units): base[0]=col, base[1]=row.
    base = jnp.stack(
        [jnp.tile(jnp.arange(W, dtype=jnp.float32), H),
         jnp.repeat(jnp.arange(H, dtype=jnp.float32), W)], axis=0)             # (2, H*W)

    # VMEM budget: double-buffered inputs + one-hot + matmul result + epilogue temps.
    est = (4 * H * W                                   # tmap bf16 x2 buffers
           + 2 * (8 * N + 8 * N + 4 * N + 2 * N)       # base/off/f/tflat blocks x2 buffers
           + 2 * W * N                                 # one-hot (bf16)
           + 12 * H * N                                # G (f32) + masked temporaries
           + (1 << 20))
    try:
        phys = pltpu.get_tpu_info().vmem_capacity_bytes
    except Exception:
        phys = 64 << 20                                # v7x per-core VMEM (fleet minimum)
    vmem_limit = int(min(phys * 3 // 4, max(16 << 20, 2 * est)))

    kernel = functools.partial(_conf_loss_kernel, H=H, W=W, eps=eps)

    partial = pl.pallas_call(
        kernel,
        out_shape=jax.ShapeDtypeStruct((B, nrb, 1, 1), jnp.float32),
        grid_spec=pltpu.PrefetchScalarGridSpec(
            num_scalar_prefetch=0,
            grid=(B, nrb),
            in_specs=[
                # pixel-index grid (batch-invariant): kernel sees (2, N)
                pl.BlockSpec((2, N), lambda b, i: (0, i)),
                # offsets: kernel sees (2, N)
                pl.BlockSpec((pl.Squeezed(), 2, N), lambda b, i: (b, 0, i)),
                # confidence: kernel sees (1, N)
                pl.BlockSpec((pl.Squeezed(), 1, N), lambda b, i: (b, 0, i)),
                # full masked label image per batch (constant across row-blocks -> no re-DMA)
                # TODO(synk): pipeline_mode=pl.Buffered(1) would single-buffer this on v7x.
                pl.BlockSpec((pl.Squeezed(), H, W), lambda b, i: (b, 0, 0)),
                # lane-dense masked labels of this row-block: kernel sees (1, N)
                pl.BlockSpec((pl.Squeezed(), 1, N), lambda b, i: (b, 0, i)),
            ],
            # per-(batch, row-block) scalar partial sums
            out_specs=pl.BlockSpec((1, 1, 1, 1), lambda b, i: (b, i, 0, 0)),
        ),
        compiler_params=pltpu.CompilerParams(
            dimension_semantics=("parallel", "parallel"),
            vmem_limit_bytes=vmem_limit,
        ),
    )(base, off_flat, f_flat, tmap, tflat)

    return jnp.sum(partial) / (H * W)


def confidence_loss_ref(offset, f, target, *, ignore_label=-1, eps=1e-7):
    """Pure-JAX reference mirroring the PyTorch forward (no upsample branch)."""
    B, _, H, W = f.shape
    xs = 2.0 * jnp.arange(W, dtype=jnp.float32) / (W - 1) - 1.0
    ys = 2.0 * jnp.arange(H, dtype=jnp.float32) / (H - 1) - 1.0
    X, Y = jnp.meshgrid(xs, ys)
    tmp = jnp.where(target == ignore_label, 0, target).astype(jnp.float32)   # (B,H,W)
    off = jnp.transpose(offset.astype(jnp.float32), (0, 2, 3, 1))            # (B,H,W,2)
    gx = X[None] + off[..., 0]
    gy = Y[None] + off[..., 1]
    px = jnp.clip((gx + 1.0) * (W - 1) * 0.5, 0.0, W - 1.0)
    py = jnp.clip((gy + 1.0) * (H - 1) * 0.5, 0.0, H - 1.0)
    xi = jnp.round(px).astype(jnp.int32)
    yi = jnp.round(py).astype(jnp.int32)
    bidx = jnp.arange(B)[:, None, None]
    H_s = tmp[bidx, yi, xi]
    mask = (tmp == H_s)
    fm = f.astype(jnp.float32)[:, 0]
    loss = jnp.where(mask, -jnp.log(fm + eps), -jnp.log(1.0 - fm + eps))
    return jnp.sum(loss) / (H * W)


if __name__ == "__main__":
    key = jax.random.PRNGKey(0)
    k1, k2, k3 = jax.random.split(key, 3)

    B, H, W = 2, 16, 16
    f = jax.random.uniform(k1, (B, 1, H, W), jnp.float32, minval=0.05, maxval=0.95)
    offset = jax.random.uniform(k2, (B, 2, H, W), jnp.float32, minval=-0.2, maxval=0.2)
    target = jax.random.randint(k3, (B, H, W), -1, 4, dtype=jnp.int32)  # includes ignore=-1

    loss = jax.block_until_ready(confidence_loss_pallas(offset, f, target))
    ref = jax.block_until_ready(confidence_loss_ref(offset, f, target))
    assert jnp.abs(loss - ref) < 1e-3 * jnp.maximum(1.0, jnp.abs(ref)), (loss, ref)

    print("KERNEL_OK")
</pallas_src>

<mosaic_0001>
module attributes {stable_mosaic.version = 11 : i64} {
  func.func @_conf_loss_kernel(%arg0: i32, %arg1: i32, %arg2: memref<2x256xf32, #tpu.memory_space<vmem>>, %arg3: memref<1x2x256xf32, #tpu.memory_space<vmem>>, %arg4: memref<1x1x256xf32, #tpu.memory_space<vmem>>, %arg5: memref<1x16x16xbf16, #tpu.memory_space<vmem>>, %arg6: memref<1x1x256xbf16, #tpu.memory_space<vmem>>, %arg7: memref<1x1x1x1xf32, #tpu.memory_space<vmem>>) attributes {dimension_semantics = [#tpu.dimension_semantics<parallel>, #tpu.dimension_semantics<parallel>], iteration_bounds = array<i64: 2, 1>, scalar_prefetch = 0 : i64, scratch_operands = 0 : i64, tpu.core_type = #tpu.core_type<tc>, window_params = [{transform_indices = @transform_0, window_bounds = array<i64: 2, 256>}, {transform_indices = @transform_1, window_bounds = array<i64: 1, 2, 256>}, {transform_indices = @transform_2, window_bounds = array<i64: 1, 1, 256>}, {transform_indices = @transform_3, window_bounds = array<i64: 1, 16, 16>}, {transform_indices = @transform_4, window_bounds = array<i64: 1, 1, 256>}, {transform_indices = @transform_5, window_bounds = array<i64: 1, 1, 1, 1>}]} {
    %c0 = arith.constant 0 : index
    %c0_0 = arith.constant 0 : index
    %0 = vector.load %arg2[%c0, %c0_0] : memref<2x256xf32, #tpu.memory_space<vmem>>, vector<1x256xf32>
    %c1 = arith.constant 1 : index
    %c0_1 = arith.constant 0 : index
    %1 = vector.load %arg2[%c1, %c0_1] : memref<2x256xf32, #tpu.memory_space<vmem>>, vector<1x256xf32>
    %c0_2 = arith.constant 0 : index
    %c0_3 = arith.constant 0 : index
    %c0_4 = arith.constant 0 : index
    %2 = vector.load %arg3[%c0_2, %c0_3, %c0_4] : memref<1x2x256xf32, #tpu.memory_space<vmem>>, vector<1x1x256xf32>
    %3 = vector.shape_cast %2 : vector<1x1x256xf32> to vector<1x256xf32>
    %c0_5 = arith.constant 0 : index
    %c1_6 = arith.constant 1 : index
    %c0_7 = arith.constant 0 : index
    %4 = vector.load %arg3[%c0_5, %c1_6, %c0_7] : memref<1x2x256xf32, #tpu.memory_space<vmem>>, vector<1x1x256xf32>
    %5 = vector.shape_cast %4 : vector<1x1x256xf32> to vector<1x256xf32>
    %cst = arith.constant 7.500000e+00 : f32
    %6 = vector.broadcast %cst : f32 to vector<1x256xf32>
    %7 = arith.mulf %3, %6 : vector<1x256xf32>
    %8 = arith.addf %0, %7 : vector<1x256xf32>
    %cst_8 = arith.constant 0.000000e+00 : f32
    %cst_9 = arith.constant 1.500000e+01 : f32
    %9 = vector.broadcast %cst_8 : f32 to vector<1x256xf32>
    %10 = arith.maximumf %9, %8 : vector<1x256xf32>
    %11 = vector.broadcast %cst_9 : f32 to vector<1x256xf32>
    %12 = arith.minimumf %11, %10 : vector<1x256xf32>
    %cst_10 = arith.constant 7.500000e+00 : f32
    %13 = vector.broadcast %cst_10 : f32 to vector<1x256xf32>
    %14 = arith.mulf %5, %13 : vector<1x256xf32>
    %15 = arith.addf %1, %14 : vector<1x256xf32>
    %cst_11 = arith.constant 0.000000e+00 : f32
    %cst_12 = arith.constant 1.500000e+01 : f32
    %16 = vector.broadcast %cst_11 : f32 to vector<1x256xf32>
    %17 = arith.maximumf %16, %15 : vector<1x256xf32>
    %18 = vector.broadcast %cst_12 : f32 to vector<1x256xf32>
    %19 = arith.minimumf %18, %17 : vector<1x256xf32>
    %20 = math.roundeven %12 : vector<1x256xf32>
    %21 = arith.fptosi %20 : vector<1x256xf32> to vector<1x256xi32>
    %22 = math.roundeven %19 : vector<1x256xf32>
    %23 = arith.fptosi %22 : vector<1x256xf32> to vector<1x256xi32>
    %24 = tpu.iota {dimensions = array<i32: 0>} : vector<16x256xi32>
    %25 = vector.broadcast %21 : vector<1x256xi32> to vector<16x256xi32>
    %26 = arith.cmpi eq, %24, %25 : vector<16x256xi32>
    %27 = arith.extui %26 : vector<16x256xi1> to vector<16x256xi32>
    %28 = arith.sitofp %27 : vector<16x256xi32> to vector<16x256xf32>
    %29 = arith.truncf %28 : vector<16x256xf32> to vector<16x256xbf16>
    %c0_13 = arith.constant 0 : index
    %c0_14 = arith.constant 0 : index
    %c0_15 = arith.constant 0 : index
    %30 = vector.load %arg5[%c0_13, %c0_14, %c0_15] : memref<1x16x16xbf16, #tpu.memory_space<vmem>>, vector<1x16x16xbf16>
    %31 = vector.shape_cast %30 : vector<1x16x16xbf16> to vector<16x16xbf16>
    %cst_16 = arith.constant dense<0.000000e+00> : vector<16x256xf32>
    %32 = tpu.matmul %31, %29, %cst_16 {dimension_numbers = #tpu.dot_dimension_numbers<[1], [0], [0], [1], [0, 0, 1, 1], [], []>} : vector<16x16xbf16>, vector<16x256xbf16>, vector<16x256xf32> -> vector<16x256xf32>
    %33 = tpu.iota {dimensions = array<i32: 0>} : vector<16x256xi32>
    %34 = vector.broadcast %23 : vector<1x256xi32> to vector<16x256xi32>
    %35 = arith.cmpi eq, %33, %34 : vector<16x256xi32>
    %cst_17 = arith.constant 0.000000e+00 : f32
    %36 = vector.broadcast %cst_17 : f32 to vector<16x256xf32>
    %37 = arith.select %35, %32, %36 : vector<16x256xi1>, vector<16x256xf32>
    %cst_18 = arith.constant dense<0.000000e+00> : vector<256xf32>
    %38 = vector.multi_reduction <add>, %37, %cst_18 [0] : vector<16x256xf32> to vector<256xf32>
    %39 = vector.shape_cast %38 : vector<256xf32> to vector<1x256xf32>
    %c0_19 = arith.constant 0 : index
    %c0_20 = arith.constant 0 : index
    %c0_21 = arith.constant 0 : index
    %40 = vector.load %arg6[%c0_19, %c0_20, %c0_21] : memref<1x1x256xbf16, #tpu.memory_space<vmem>>, vector<1x1x256xbf16>
    %41 = vector.shape_cast %40 : vector<1x1x256xbf16> to vector<1x256xbf16>
    %42 = arith.extf %41 : vector<1x256xbf16> to vector<1x256xf32>
    %c0_22 = arith.constant 0 : index
    %c0_23 = arith.constant 0 : index
    %c0_24 = arith.constant 0 : index
    %43 = vector.load %arg4[%c0_22, %c0_23, %c0_24] : memref<1x1x256xf32, #tpu.memory_space<vmem>>, vector<1x1x256xf32>
    %44 = vector.shape_cast %43 : vector<1x1x256xf32> to vector<1x256xf32>
    %45 = arith.cmpf oeq, %42, %39 : vector<1x256xf32>
    %cst_25 = arith.constant 1.000000e+00 : f32
    %46 = vector.broadcast %cst_25 : f32 to vector<1x256xf32>
    %47 = arith.subf %46, %44 : vector<1x256xf32>
    %48 = arith.select %45, %44, %47 : vector<1x256xi1>, vector<1x256xf32>
    %cst_26 = arith.constant 1.000000e-07 : f32
    %49 = vector.broadcast %cst_26 : f32 to vector<1x256xf32>
    %50 = arith.addf %48, %49 : vector<1x256xf32>
    %51 = math.log %50 : vector<1x256xf32>
    %cst_27 = arith.constant 0.000000e+00 : f32
    %52 = vector.broadcast %cst_27 : f32 to vector<1x256xf32>
    %53 = arith.subf %52, %51 : vector<1x256xf32>
    %cst_28 = arith.constant 0.000000e+00 : f32
    %54 = vector.broadcast %cst_28 : f32 to vector<1x1x1x1xf32>
    %55 = vector.shape_cast %53 : vector<1x256xf32> to vector<1x1x256xf32>
    %cst_29 = arith.constant dense<0.000000e+00> : vector<1xf32>
    %56 = vector.multi_reduction <add>, %55, %cst_29 [1, 2] : vector<1x1x256xf32> to vector<1xf32>
    %57 = vector.shape_cast %56 : vector<1xf32> to vector<1x1x1xf32>
    %58 = vector.extract %57[0, 0, 0] : f32 from vector<1x1x1xf32>
    %59 = vector.broadcast %58 : f32 to vector<1x1x1x1xf32>
    %60 = arith.addf %54, %59 : vector<1x1x1x1xf32>
    %c0_30 = arith.constant 0 : index
    %c0_31 = arith.constant 0 : index
    %c0_32 = arith.constant 0 : index
    %c0_33 = arith.constant 0 : index
    %61 = vector.load %arg7[%c0_30, %c0_31, %c0_32, %c0_33] : memref<1x1x1x1xf32, #tpu.memory_space<vmem>>, vector<1x1x1x1xf32>
    tpu.vector_store %arg7[%c0_30, %c0_31, %c0_32, %c0_33], %60 {strides = array<i32>} : memref<1x1x1x1xf32, #tpu.memory_space<vmem>>, vector<1x1x1x1xf32>,
    return
  }
  func.func @transform_0(%arg0: i32, %arg1: i32) -> (i32, i32) {
    %c0_i32 = arith.constant 0 : i32
    %c0_i32_0 = arith.constant 0 : i32
    return %c0_i32, %arg1 : i32, i32
  }
  func.func @transform_1(%arg0: i32, %arg1: i32) -> (i32, i32, i32) {
    %c0_i32 = arith.constant 0 : i32
    %c0_i32_0 = arith.constant 0 : i32
    return %arg0, %c0_i32, %arg1 : i32, i32, i32
  }
  func.func @transform_2(%arg0: i32, %arg1: i32) -> (i32, i32, i32) {
    %c0_i32 = arith.constant 0 : i32
    %c0_i32_0 = arith.constant 0 : i32
    return %arg0, %c0_i32, %arg1 : i32, i32, i32
  }
  func.func @transform_3(%arg0: i32, %arg1: i32) -> (i32, i32, i32) {
    %c0_i32 = arith.constant 0 : i32
    %c0_i32_0 = arith.constant 0 : i32
    %c0_i32_1 = arith.constant 0 : i32
    return %arg0, %c0_i32, %c0_i32_0 : i32, i32, i32
  }
  func.func @transform_4(%arg0: i32, %arg1: i32) -> (i32, i32, i32) {
    %c0_i32 = arith.constant 0 : i32
    %c0_i32_0 = arith.constant 0 : i32
    return %arg0, %c0_i32, %arg1 : i32, i32, i32
  }
  func.func @transform_5(%arg0: i32, %arg1: i32) -> (i32, i32, i32, i32) {
    %c0_i32 = arith.constant 0 : i32
    %c0_i32_0 = arith.constant 0 : i32
    %c0_i32_1 = arith.constant 0 : i32
    return %arg0, %arg1, %c0_i32, %c0_i32_0 : i32, i32, i32, i32
  }
}

</mosaic_0001>

<llo_original>
// kernel: tpu_custom_call.1
$region0: #{tpu_custom_call.1}
  #allocation0 [shape = 'u32[]', space=smem, size = 0x4, offset = 0x4, fixed_abs, tag = 'smem constant byte address 0x4 - core index']
  #allocation1 [shape = 'u32[144,128]{1,0:T(1,128)}', space=vmem, size = 0x12000, scoped, tag = 'internal scratch']
  %s0 = inlined_call_operand.hbm [shape: f32[2,256], index: 0, kind: input, shape index: {}]
  %s1 = inlined_call_operand.hbm [shape: f32[2,2,256], index: 1, kind: input, shape index: {}]
  %s2 = inlined_call_operand.hbm [shape: f32[2,1,256], index: 2, kind: input, shape index: {}]
  %s3 = inlined_call_operand.vmem [shape: bf16[2,16,16], index: 3, kind: input, shape index: {}]
  %s4 = inlined_call_operand.vmem [shape: bf16[2,1,256], index: 4, kind: input, shape index: {}]
  %s5 = inlined_call_operand.vmem [shape: f32[2,1,1,1], index: 5, kind: output, shape index: {}]
  %s6 = sld [smem:[#allocation0]]
  $region65: #{tpu_custom_call.1} parent=0
    _
  %s8 = ssub.s32 1, %s6
  %s9 = scalar_select 0, %s8, %s6
  $region1: #{tpu_custom_call.1} parent=0
    #allocation2 [shape = 'u8[2048]{0}', space=vmem, size = 0x800, scoped, tag = 'input window, operand 0, single buffered']
    #allocation3 [shape = 's32[2]{0}', space=sflag, size = 0x8, scoped, tag = 'scoped memory for tpu_custom_call.1']
    #allocation4 [shape = 'u8[4096]{0}', space=vmem, size = 0x1000, scoped, tag = 'input window, operand 1']
    #allocation5 [shape = 's32[2]{0}', space=sflag, size = 0x8, scoped, tag = 'scoped memory for tpu_custom_call.1']
    #allocation6 [shape = 'u8[2048]{0}', space=vmem, size = 0x800, scoped, tag = 'input window, operand 2']
    %10 = vsyncpa [#allocation3], 0
    %11 = vsyncpa [#allocation5], 0
    %s12 = scalar_lea.sflag [#allocation5], 1
    %13 = vsyncpa %s12, 0
    loop: start=0, step=1, limit=4
    $region2: #{tpu_custom_call.1} parent=1 // loop_pre_header
      _
    $region3: #{tpu_custom_call.1} parent=1 // loop_header
      %s15 = sphi 0, %s19
      %p16 = scmp.ge.s32.totalorder %s15, 4
      %s22 = sphi 0, %s34
      %s23 = sphi 0, %s30
      %s24 = sphi 0, %s22
      %s25 = sphi 0, %s23
      %s26 = sphi 0, %s24
      %s27 = sphi 0, %s25
      %s37 = sphi 0, %s39
      %s40 = sphi 0, %s37
      %s41 = sphi 0, %s40
      %s57 = sphi 0, %s41
      %s65 = sphi 0, %s67
      %s68 = sphi 0, %s65
      %s69 = sphi 0, %s68
      %s85 = sphi 0, %s69
      %s93 = sphi 0, %s95
      %s96 = sphi 0, %s93
      %s97 = sphi 0, %s96
      %s113 = sphi 0, %s97
      %s119 = sphi 0, %s121
      %s122 = sphi 0, %s119
      %s123 = sphi 0, %s122
      %s139 = sphi 0, %s123
      %s147 = sphi 0, %s149
      %s150 = sphi 0, %s147
      %s151 = sphi 0, %s150
      %s167 = sphi 0, %s151
      %s175 = sphi 0, %s177
      %s178 = sphi 0, %s175
      %s179 = sphi 0, %s178
      %s195 = sphi 0, %s179
    $region4: #{tpu_custom_call.1} parent=1 // loop_header_branch
      %18 = sbr.rel (%p16) target = $region8
    $region5: #{tpu_custom_call.1} parent=1 // loop_body
      %s20 = ssub.s32 %s15, 1
      %s21 = ssub.s32 %s15, 2
      %s28 = sadd.s32 1, %s23
      %p29 = scmp.ge.s32.totalorder %s28, 1
      %s30 = scalar_select %p29, 0, %s28
      %s31 = sadd.s32 1, %s22
      %s32 = scalar_select %p29, %s31, %s22
      %p33 = scmp.ge.s32.totalorder %s32, 2
      %s34 = scalar_select %p33, 0, %s32
      %s35 = ssub.s32 %s23, %s30
      %p36 = scmp.eq.s32.totalorder %s35, 0
      %s38 = sadd.s32 %s37, 1
      %s39 = scalar_select %p36, %s37, %s38
      %p42 = pneg %p36
      %p43 = scmp.eq.s32.totalorder %s15, 1
      %p44 = por %p42, %p43
      %p45 = scmp.ne.s32.totalorder %s37, %s40
      %p46 = scmp.eq.s32.totalorder %s15, 0
      %p47 = por %p45, %p46
      %p48 = scmp.ne.s32.totalorder %s37, %s40
      %p49 = scmp.eq.s32.totalorder %s20, 1
      %p50 = por %p48, %p49
      %p51 = scmp.ne.s32.totalorder %s40, %s41
      %p52 = scmp.eq.s32.totalorder %s20, 0
      %p53 = por %p51, %p52
      %p54 = scmp.ne.s32.totalorder %s40, %s41
      %p55 = scmp.eq.s32.totalorder %s21, 1
      %p56 = por %p54, %p55
      %p58 = scmp.ne.s32.totalorder %s41, %s57
      %p59 = scmp.eq.s32.totalorder %s21, 0
      %p60 = por %p58, %p59
      %s61 = ssub.s32 %s22, %s34
      %s62 = ssub.s32 %s23, %s30
      %s63 = sor.u32 %s61, %s62
      %p64 = scmp.eq.s32.totalorder %s63, 0
      %s66 = sadd.s32 %s65, 1
      %s67 = scalar_select %p64, %s65, %s66
      %p70 = pneg %p64
      %p71 = scmp.eq.s32.totalorder %s15, 1
      %p72 = por %p70, %p71
      %p73 = scmp.ne.s32.totalorder %s65, %s68
      %p74 = scmp.eq.s32.totalorder %s15, 0
      %p75 = por %p73, %p74
      %p76 = scmp.ne.s32.totalorder %s65, %s68
      %p77 = scmp.eq.s32.totalorder %s20, 1
      %p78 = por %p76, %p77
      %p79 = scmp.ne.s32.totalorder %s68, %s69
      %p80 = scmp.eq.s32.totalorder %s20, 0
      %p81 = por %p79, %p80
      %p82 = scmp.ne.s32.totalorder %s68, %s69
      %p83 = scmp.eq.s32.totalorder %s21, 1
      %p84 = por %p82, %p83
      %p86 = scmp.ne.s32.totalorder %s69, %s85
      %p87 = scmp.eq.s32.totalorder %s21, 0
      %p88 = por %p86, %p87
      %s89 = ssub.s32 %s22, %s34
      %s90 = ssub.s32 %s23, %s30
      %s91 = sor.u32 %s89, %s90
      %p92 = scmp.eq.s32.totalorder %s91, 0
      %s94 = sadd.s32 %s93, 1
      %s95 = scalar_select %p92, %s93, %s94
      %p98 = pneg %p92
      %p99 = scmp.eq.s32.totalorder %s15, 1
      %p100 = por %p98, %p99
      %p101 = scmp.ne.s32.totalorder %s93, %s96
      %p102 = scmp.eq.s32.totalorder %s15, 0
      %p103 = por %p101, %p102
      %p104 = scmp.ne.s32.totalorder %s93, %s96
      %p105 = scmp.eq.s32.totalorder %s20, 1
      %p106 = por %p104, %p105
      %p107 = scmp.ne.s32.totalorder %s96, %s97
      %p108 = scmp.eq.s32.totalorder %s20, 0
      %p109 = por %p107, %p108
      %p110 = scmp.ne.s32.totalorder %s96, %s97
      %p111 = scmp.eq.s32.totalorder %s21, 1
      %p112 = por %p110, %p111
      %p114 = scmp.ne.s32.totalorder %s97, %s113
      %p115 = scmp.eq.s32.totalorder %s21, 0
      %p116 = por %p114, %p115
      %s117 = ssub.s32 %s22, %s34
      %p118 = scmp.eq.s32.totalorder %s117, 0
      %s120 = sadd.s32 %s119, 1
      %s121 = scalar_select %p118, %s119, %s120
      %p124 = pneg %p118
      %p125 = scmp.eq.s32.totalorder %s15, 1
      %p126 = por %p124, %p125
      %p127 = scmp.ne.s32.totalorder %s119, %s122
      %p128 = scmp.eq.s32.totalorder %s15, 0
      %p129 = por %p127, %p128
      %p130 = scmp.ne.s32.totalorder %s119, %s122
      %p131 = scmp.eq.s32.totalorder %s20, 1
      %p132 = por %p130, %p131
      %p133 = scmp.ne.s32.totalorder %s122, %s123
      %p134 = scmp.eq.s32.totalorder %s20, 0
      %p135 = por %p133, %p134
      %p136 = scmp.ne.s32.totalorder %s122, %s123
      %p137 = scmp.eq.s32.totalorder %s21, 1
      %p138 = por %p136, %p137
      %p140 = scmp.ne.s32.totalorder %s123, %s139
      %p141 = scmp.eq.s32.totalorder %s21, 0
      %p142 = por %p140, %p141
      %s143 = ssub.s32 %s22, %s34
      %s144 = ssub.s32 %s23, %s30
      %s145 = sor.u32 %s143, %s144
      %p146 = scmp.eq.s32.totalorder %s145, 0
      %s148 = sadd.s32 %s147, 1
      %s149 = scalar_select %p146, %s147, %s148
      %p152 = pneg %p146
      %p153 = scmp.eq.s32.totalorder %s15, 1
      %p154 = por %p152, %p153
      %p155 = scmp.ne.s32.totalorder %s147, %s150
      %p156 = scmp.eq.s32.totalorder %s15, 0
      %p157 = por %p155, %p156
      %p158 = scmp.ne.s32.totalorder %s147, %s150
      %p159 = scmp.eq.s32.totalorder %s20, 1
      %p160 = por %p158, %p159
      %p161 = scmp.ne.s32.totalorder %s150, %s151
      %p162 = scmp.eq.s32.totalorder %s20, 0
      %p163 = por %p161, %p162
      %p164 = scmp.ne.s32.totalorder %s150, %s151
      %p165 = scmp.eq.s32.totalorder %s21, 1
      %p166 = por %p164, %p165
      %p168 = scmp.ne.s32.totalorder %s151, %s167
      %p169 = scmp.eq.s32.totalorder %s21, 0
      %p170 = por %p168, %p169
      %s171 = ssub.s32 %s22, %s34
      %s172 = ssub.s32 %s23, %s30
      %s173 = sor.u32 %s171, %s172
      %p174 = scmp.eq.s32.totalorder %s173, 0
      %s176 = sadd.s32 %s175, 1
      %s177 = scalar_select %p174, %s175, %s176
      %p180 = pneg %p174
      %p181 = scmp.eq.s32.totalorder %s15, 1
      %p182 = por %p180, %p181
      %p183 = scmp.ne.s32.totalorder %s175, %s178
      %p184 = scmp.eq.s32.totalorder %s15, 0
      %p185 = por %p183, %p184
      %p186 = scmp.ne.s32.totalorder %s175, %s178
      %p187 = scmp.eq.s32.totalorder %s20, 1
      %p188 = por %p186, %p187
      %p189 = scmp.ne.s32.totalorder %s178, %s179
      %p190 = scmp.eq.s32.totalorder %s20, 0
      %p191 = por %p189, %p190
      %p192 = scmp.ne.s32.totalorder %s178, %s179
      %p193 = scmp.eq.s32.totalorder %s21, 1
      %p194 = por %p192, %p193
      %p196 = scmp.ne.s32.totalorder %s179, %s195
      %p197 = scmp.eq.s32.totalorder %s21, 0
      %p198 = por %p196, %p197
      %p199 = scmp.le.s32.totalorder 1, %s15
      %p200 = scmp.lt.s32.totalorder %s15, 3
      %p201 = pnand %p199, %p200
      %p202 = pneg %p201
      // Predicated region
      $region9: #{tpu_custom_call.1} parent=5 // pred_check
        _
      $region10: #{tpu_custom_call.1} parent=5 // pred_check_branch
        %204 = sbr.rel (%p201) target = $region12
      $region11: #{tpu_custom_call.1} parent=5 // pred_region
        %s205 = ssub.s32 %s15, 1
        // Predicated region
        $region13: #{tpu_custom_call.1} parent=11 // pred_check
          %p206 = pneg %p53
        $region14: #{tpu_custom_call.1} parent=11 // pred_check_branch
          %208 = sbr.rel (%p206) target = $region16
        $region15: #{tpu_custom_call.1} parent=11 // pred_region
          %s209 = smul.u32 2, %s25
          %s211 = ssub.s32 64, 64
          %212 = vsyncadd [#allocation3], %s211
          %s213 = smul.addr %s209, 32
          %s214 = scalar_lea.hbm %s0, %s213
          %s216 = sshll.u32 [#allocation2], 4
          %s217 = int_to_ptr.vmem [resolvable:$true] %s216
          %219 = dma.hbm_to_vmem [thread:$0]  %s214, 64, %s217, [#allocation3]
        $region16: #{tpu_custom_call.1} parent=11 // pred_fallthru
          _
      $region12: #{tpu_custom_call.1} parent=5 // pred_fallthru
        _
      %p220 = scmp.lt.s32.totalorder %s15, 2
      // Predicated region
      $region17: #{tpu_custom_call.1} parent=5 // pred_check
        %p221 = pneg %p220
      $region18: #{tpu_custom_call.1} parent=5 // pred_check_branch
        %223 = sbr.rel (%p221) target = $region20
      $region19: #{tpu_custom_call.1} parent=5 // pred_region
        // Predicated region
        $region21: #{tpu_custom_call.1} parent=19 // pred_check
          %p224 = pneg %p75
        $region22: #{tpu_custom_call.1} parent=19 // pred_check_branch
          %226 = sbr.rel (%p224) target = $region24
        $region23: #{tpu_custom_call.1} parent=19 // pred_region
          %s227 = sand.u32 %s15, 1
          %s228 = scalar_lea.sflag [#allocation5], %s227
          %s229 = sand.u32 %s65, 1
          %s230 = smul.addr %s229, 4
          %s231 = scalar_lea.vmem [#allocation4], %s230
          %s232 = smul.u32 2, %s23
          %s234 = ssub.s32 64, 64
          %235 = vsyncadd %s228, %s234
          %s236 = smul.addr %s22, 2
          %s237 = sadd.s32 %s232, %s236
          %s238 = smul.addr %s237, 32
          %s239 = scalar_lea.hbm %s1, %s238
          %s241 = sshll.u32 %s231, 4
          %s242 = int_to_ptr.vmem [resolvable:$true] %s241
          %244 = dma.hbm_to_vmem [thread:$0]  %s239, 64, %s242, %s228
        $region24: #{tpu_custom_call.1} parent=19 // pred_fallthru
          _
        // Predicated region
        $region25: #{tpu_custom_call.1} parent=19 // pred_check
          %p245 = pneg %p103
        $region26: #{tpu_custom_call.1} parent=19 // pred_check_branch
          %247 = sbr.rel (%p245) target = $region28
        $region27: #{tpu_custom_call.1} parent=19 // pred_region
          %s248 = sand.u32 %s15, 1
          %s249 = scalar_lea.sflag [#allocation5], %s248
          %s250 = sand.u32 %s93, 1
          %s251 = smul.addr %s250, 2
          %s252 = scalar_lea.vmem [#allocation6], %s251
          %s253 = smul.u32 2, %s23
          %s255 = ssub.s32 32, 32
          %256 = vsyncadd %s249, %s255
          %s257 = smul.addr %s22, 2
          %s258 = sadd.s32 %s253, %s257
          %s259 = smul.addr %s258, 16
          %s260 = scalar_lea.hbm %s2, %s259
          %s262 = sshll.u32 %s252, 4
          %s263 = int_to_ptr.vmem [resolvable:$true] %s262
          %265 = dma.hbm_to_vmem [thread:$0]  %s260, 32, %s263, %s249
        $region28: #{tpu_custom_call.1} parent=19 // pred_fallthru
          _
        // Predicated region
        $region29: #{tpu_custom_call.1} parent=19 // pred_check
          %p266 = pneg %p129
        $region30: #{tpu_custom_call.1} parent=19 // pred_check_branch
          %268 = sbr.rel (%p266) target = $region32
        $region31: #{tpu_custom_call.1} parent=19 // pred_region
          %p269 = scmp.lt.s32.totalorder %s22, 1
          %s270 = scalar_select %p269, %s22, 1
          %s271 = smul.addr %s270, 2
          %s272 = smul.addr %s271, 4
          %s273 = scalar_lea.vmem %s3, %s272
        $region32: #{tpu_custom_call.1} parent=19 // pred_fallthru
          _
        // Predicated region
        $region33: #{tpu_custom_call.1} parent=19 // pred_check
          %p274 = pneg %p157
        $region34: #{tpu_custom_call.1} parent=19 // pred_check_branch
          %276 = sbr.rel (%p274) target = $region36
        $region35: #{tpu_custom_call.1} parent=19 // pred_region
          %s277 = smul.u32 2, %s23
          %p278 = scmp.lt.s32.totalorder %s22, 1
          %s279 = scalar_select %p278, %s22, 1
          %p280 = scmp.lt.s32.totalorder %s277, 1
          %s281 = scalar_select %p280, %s277, 1
          %s282 = smul.addr %s279, 2
          %s283 = sadd.s32 %s281, %s282
          %s284 = scalar_lea.vmem %s4, %s283
          %s285 = smul.u32 2, %s23
        $region36: #{tpu_custom_call.1} parent=19 // pred_fallthru
          _
      $region20: #{tpu_custom_call.1} parent=5 // pred_fallthru
        _
      %p286 = scmp.le.s32.totalorder 1, %s15
      %p287 = scmp.lt.s32.totalorder %s15, 3
      %p288 = pnand %p286, %p287
      %p289 = pneg %p288
      // Predicated region
      $region37: #{tpu_custom_call.1} parent=5 // pred_check
        _
      $region38: #{tpu_custom_call.1} parent=5 // pred_check_branch
        %291 = sbr.rel (%p288) target = $region40
      $region39: #{tpu_custom_call.1} parent=5 // pred_region
        %s292 = ssub.s32 %s15, 1
        // Predicated region
        $region41: #{tpu_custom_call.1} parent=39 // pred_check
          %p293 = pneg %p53
        $region42: #{tpu_custom_call.1} parent=39 // pred_check_branch
          %295 = sbr.rel (%p293) target = $region44
        $region43: #{tpu_custom_call.1} parent=39 // pred_region
          %296 = dma.done [#allocation3], 64
        $region44: #{tpu_custom_call.1} parent=39 // pred_fallthru
          _
        %s297 = sand.u32 %s20, 1
        %s298 = scalar_lea.sflag [#allocation5], %s297
        %s299 = sand.u32 %s68, 1
        %s300 = smul.addr %s299, 4
        %s301 = scalar_lea.vmem [#allocation4], %s300
        // Predicated region
        $region45: #{tpu_custom_call.1} parent=39 // pred_check
          %p302 = pneg %p81
        $region46: #{tpu_custom_call.1} parent=39 // pred_check_branch
          %304 = sbr.rel (%p302) target = $region48
        $region47: #{tpu_custom_call.1} parent=39 // pred_region
          %305 = dma.done %s298, 64
        $region48: #{tpu_custom_call.1} parent=39 // pred_fallthru
          _
        %s306 = sand.u32 %s20, 1
        %s307 = scalar_lea.sflag [#allocation5], %s306
        %s308 = sand.u32 %s96, 1
        %s309 = smul.addr %s308, 2
        %s310 = scalar_lea.vmem [#allocation6], %s309
        // Predicated region
        $region49: #{tpu_custom_call.1} parent=39 // pred_check
          %p311 = pneg %p109
        $region50: #{tpu_custom_call.1} parent=39 // pred_check_branch
          %313 = sbr.rel (%p311) target = $region52
        $region51: #{tpu_custom_call.1} parent=39 // pred_region
          %314 = dma.done %s307, 32
        $region52: #{tpu_custom_call.1} parent=39 // pred_fallthru
          _
        %p315 = pneg %p53
        %p316 = pneg %p50
        %s317 = sand.u32 %s20, 1
        %s318 = scalar_lea.sflag [#allocation5], %s317
        %s319 = sand.u32 %s68, 1
        %s320 = smul.addr %s319, 4
        %s321 = scalar_lea.vmem [#allocation4], %s320
        %p322 = pneg %p81
        %p323 = pneg %p78
        %s324 = sand.u32 %s20, 1
        %s325 = scalar_lea.sflag [#allocation5], %s324
        %s326 = sand.u32 %s96, 1
        %s327 = smul.addr %s326, 2
        %s328 = scalar_lea.vmem [#allocation6], %s327
        %p329 = pneg %p109
        %p330 = pneg %p106
        %p331 = scmp.lt.s32.totalorder %s24, 1
        %s332 = scalar_select %p331, %s24, 1
        %s333 = smul.addr %s332, 2
        %s334 = smul.addr %s333, 4
        %s335 = scalar_lea.vmem %s3, %s334
        %p336 = pneg %p135
        %p337 = pneg %p132
        %s338 = smul.u32 2, %s25
        %p339 = scmp.lt.s32.totalorder %s24, 1
        %s340 = scalar_select %p339, %s24, 1
        %p341 = scmp.lt.s32.totalorder %s338, 1
        %s342 = scalar_select %p341, %s338, 1
        %s343 = smul.addr %s340, 2
        %s344 = sadd.s32 %s342, %s343
        %s345 = scalar_lea.vmem %s4, %s344
        %p346 = pneg %p163
        %p347 = pneg %p160
        %p348 = pneg %p191
        %p349 = pneg %p188
        %p350 = scmp.lt.s32.totalorder %s24, 1
        %s351 = scalar_select %p350, %s24, 1
        %p352 = scmp.lt.s32.totalorder %s25, 0
        %s353 = scalar_select %p352, %s25, 0
        %s354 = sadd.s32 %s353, %s351
        %s355 = scalar_lea.vmem %s5, %s354
        %s356 = smul.u32 2, %s25
        %s357 = smul.u32 2, %s25
        %s358 = smul.u32 2, %s25
        %p359 = scmp.lt.s32.totalorder %s24, 1
        %s360 = scalar_select %p359, %s24, 1
        %s361 = smul.addr %s360, 2
        %s362 = smul.addr %s361, 4
        %s363 = scalar_lea.vmem %s3, %s362
        %s364 = smul.u32 2, %s25
        %p365 = scmp.lt.s32.totalorder %s24, 1
        %s366 = scalar_select %p365, %s24, 1
        %p367 = scmp.lt.s32.totalorder %s364, 1
        %s368 = scalar_select %p367, %s364, 1
        %s369 = smul.addr %s366, 2
        %s370 = sadd.s32 %s368, %s369
        %s371 = scalar_lea.vmem %s4, %s370
        %s372 = smul.u32 2, %s25
        %p373 = scmp.lt.s32.totalorder %s24, 1
        %s374 = scalar_select %p373, %s24, 1
        %p375 = scmp.lt.s32.totalorder %s25, 0
        %s376 = scalar_select %p375, %s25, 0
        %s377 = sadd.s32 %s376, %s374
        %s378 = scalar_lea.vmem %s5, %s377
        %v380 = vld [vmem:[#allocation2] ss:$2 sm:$0x3]
        %s381 = scalar_lea.vmem [#allocation2], 1
        %v382 = vld [vmem:[%s381] ss:$2 sm:$0x3]
        %v383 = vld [vmem:[%s301] ss:$2 sm:$0x3]
        %s384 = scalar_lea.vmem %s301, 1 [#allocation4]
        %v385 = vld [vmem:[%s384] ss:$2 sm:$0x3]
        %v386 = vmul.f32 %v383, 7.5
        %v387 = vadd.f32 %v380, %v386
        %v388 = vmax.f32 %v387, 0.0
        %v389 = vmin.f32 %v388, 15.0
        %v390 = vmul.f32 %v385, 7.5
        %v391 = vadd.f32 %v382, %v390
        %v392 = vmax.f32 %v391, 0.0
        %v393 = vmin.f32 %v392, 15.0
        %v394 = vcvt.f32.s32.ties.to.even %v389
        %v395 = vcvt.f32.s32.ties.to.even %v393
        %v396 = vlaneseq
        %v397 = vshrl.u32 %v396, 7
        %v398 = vadd.s32 %v397, 8
        %v399 = vlaneseq
        %v400 = vshrl.u32 %v399, 7
        %v401 = vsub.s32 0, %v400
        %v402 = vrot.slane %v394, %v401
        %v403 = vlaneseq
        %v404 = vshrl.u32 %v403, 7
        %v405 = vsub.s32 1, %v404
        %v406 = vrot.slane %v394, %v405
        %vm407 = vcmp.eq.s32.totalorder %v397, %v402
        %vm408 = vcmp.eq.s32.totalorder %v397, %v406
        %vm409 = vcmp.eq.s32.totalorder %v398, %v402
        %vm410 = vcmp.eq.s32.totalorder %v398, %v406
        %v411 = vsel %vm407, 1, 0
        %v412 = vsel %vm408, 1, 0
        %v413 = vsel %vm409, 1, 0
        %v414 = vsel %vm410, 1, 0
        %v415 = vcvt.s32.f32 %v411
        %v416 = vcvt.s32.f32 %v412
        %v417 = vcvt.s32.f32 %v413
        %v418 = vcvt.s32.f32 %v414
        %v419 = vpack.c.bf16 %v417, %v415
        %v420 = vpack.c.bf16 %v418, %v416
        %v421 = vld [vmem:[%s363] sm:$0xf]
        %v422 = vld [vmem:[%s363 + $0x4] sm:$0xf]
        %v425 = vunpack.c.l.b16 %v421
        %v426 = vunpack.c.l.b16 %v422
        %v427 = vpack.c.b16 %v426, %v425
        %vm428 = vcmask 130048
        %v430 = vsel %vm428, %v427, 0
        %432 = vmatprep.subr.bf16.mxu0 %v420
        %433 = vmatpush1.bf16.msra.mxu0 %v419
        %434 = vmatprep.subr.bf16.mxu0 0
        %435 = vmatpush1.bf16.msra.mxu0 0
        %436 = vmatprep.subr.bf16.mxu0 0
        %437 = vmatpush1.bf16.msra.mxu0 0
        %438 = vmatprep.subr.bf16.mxu0 0
        %439 = vmatpush1.bf16.msra.mxu0 0
        %440 = vmatprep.subr.bf16.mxu0 0
        %441 = vmatpush1.bf16.msra.mxu0 0
        %442 = vmatprep.subr.bf16.mxu0 0
        %443 = vmatpush1.bf16.msra.mxu0 0
        %444 = vmatprep.subr.bf16.mxu0 0
        %445 = vmatpush1.bf16.msra.mxu0 0
        %446 = vmatprep.subr.bf16.mxu0 0
        %447 = vmatpush1.bf16.msra.mxu0 0
        %448 = vmatprep.subr.bf16.mxu0 0
        %449 = vmatpush1.bf16.msra.mxu0 0
        %450 = vmatprep.subr.bf16.mxu0 0
        %451 = vmatpush1.bf16.msra.mxu0 0
        %452 = vmatprep.subr.bf16.mxu0 0
        %453 = vmatpush1.bf16.msra.mxu0 0
        %454 = vmatprep.subr.bf16.mxu0 0
        %455 = vmatpush1.bf16.msra.mxu0 0
        %456 = vmatprep.subr.bf16.mxu0 0
        %457 = vmatpush1.bf16.msra.mxu0 0
        %458 = vmatprep.subr.bf16.mxu0 0
        %459 = vmatpush1.bf16.msra.mxu0 0
        %460 = vmatprep.subr.bf16.mxu0 0
        %461 = vmatpush1.bf16.msra.mxu0 0
        %462 = vmatprep.subr.bf16.mxu0 0
        %463 = vmatpush1.bf16.msra.mxu0 0
        %464 = vmatprep.mubr.bf16.mxu0 0
        %465 = vmatmul.mubr.bf16.gmra.mrb[0].mxu0 %v430
        %v466 = vpop.f32.mrb[0].mxu0
        %v467 = vadd.f32 0.0, %v466
        %v468 = vpop.f32.mrb[0].mxu0
        %v469 = vadd.f32 0.0, %v468
        %v470 = vpop.f32.mrb[0].mxu0
        %v471 = vadd.f32 0.0, %v470
        %v472 = vpop.f32.mrb[0].mxu0
        %v473 = vadd.f32 0.0, %v472
        %474 = vdwg.mxu0
        %v475 = vlaneseq
        %v476 = vshrl.u32 %v475, 7
        %v477 = vsub.s32 0, %v476
        %v478 = vrot.slane %v395, %v477
        %v479 = vlaneseq
        %v480 = vshrl.u32 %v479, 7
        %v481 = vsub.s32 1, %v480
        %v482 = vrot.slane %v395, %v481
        %vm483 = vcmp.eq.s32.totalorder %v397, %v478
        %vm484 = vcmp.eq.s32.totalorder %v397, %v482
        %vm485 = vcmp.eq.s32.totalorder %v398, %v478
        %vm486 = vcmp.eq.s32.totalorder %v398, %v482
        %v487 = vsel %vm483, %v467, 0.0
        %v488 = vsel %vm484, %v469, 0.0
        %v489 = vsel %vm485, %v471, 0.0
        %v490 = vsel %vm486, %v473, 0.0
        %v491 = vadd.f32 %v487, %v489
        %v492 = vrot.slane %v491, 4
        %v493 = vadd.f32 %v491, %v492
        %v494 = vrot.slane %v493, 2
        %v495 = vadd.f32 %v493, %v494
        %v496 = vrot.slane %v495, 1
        %v497 = vadd.f32 %v495, %v496
        %v498 = vadd.f32 %v488, %v490
        %v499 = vrot.slane %v498, 4
        %v500 = vadd.f32 %v498, %v499
        %v501 = vrot.slane %v500, 2
        %v502 = vadd.f32 %v500, %v501
        %v503 = vrot.slane %v502, 1
        %v504 = vadd.f32 %v502, %v503
        %v505 = vld [vmem:[%s371] sm:$0x3]
        %v506 = vunpack.c.l.bf16 %v505
        %v507 = vld [vmem:[%s310] sm:$0x3]
        %v510 = vcombine.low %v497, %v504
        %v512 = vunpack.c.l.s4 1983009808
        %v513 = vunpack.c.0.s8 %v512
        %v514 = vlaneseq
        %v515 = vshrl.u32 %v514, 7
        %v516 = vsub.s32 %v513, %v515
        %v517 = vrot.slane %v510, %v516
        %vm519 = vcmp.eq.f32.partialorder %v506, %v517
        %v520 = vsub.f32 1.0, %v507
        %v523 = vunpack.c.l.s4 857870592
        %v524 = vunpack.c.0.s8 %v523
        %v525 = vlaneseq
        %v526 = vshrl.u32 %v525, 7
        %v527 = vsub.s32 %v524, %v526
        %v528 = vrot.slane %v507, %v527
        %v532 = vunpack.c.l.s4 857870592
        %v533 = vunpack.c.0.s8 %v532
        %v534 = vlaneseq
        %v535 = vshrl.u32 %v534, 7
        %v536 = vsub.s32 %v533, %v535
        %v537 = vrot.slane %v520, %v536
        %v539 = vsel %vm519, %v528, %v537
        %v540 = vadd.f32 %v539, 1e-07
        %v541 = vlog2.pop %v540
        %v542 = vmul.f32 %v541, 0.6931472
        %v543 = vsub.f32 0.0, %v542
        %v545 = vlaneseq
        %v546 = vshrl.u32 %v545, 7
        %v547 = vsub.s32 0, %v546
        %v548 = vrot.slane %v543, %v547
        %v549 = vlaneseq
        %v550 = vshrl.u32 %v549, 7
        %v551 = vsub.s32 2, %v550
        %v552 = vrot.slane %v543, %v551
        %vm555 = vcmask 1040384
        %v556 = vsel %vm555, %v548, 0.0
        %v557 = vsel %vm555, %v552, 0.0
        %v558 = vadd.f32 %v556, %v557
        %559 = vadd.xlane.f32.xlu0 %v558
        %v560 = vpop.xlane.xlu0 %559
        %v561 = vrot.slane %v560, 4
        %v562 = vadd.f32 %v560, %v561
        %v563 = vrot.slane %v562, 2
        %v564 = vadd.f32 %v562, %v563
        %v565 = vrot.slane %v564, 1
        %v566 = vadd.f32 %v564, %v565
        %s567 = vtos %v566
        %v568 = vstv %s567
        %v569 = vadd.f32 %v568, 0.0
        %vm570 = vcmask 0
        %571 = vst.msk [vmem:[%s378] sm:$0x1] %vm570, %v569
        %p572 = scmp.lt.s32.totalorder %s24, 1
        %s573 = scalar_select %p572, %s24, 1
        %p574 = scmp.lt.s32.totalorder %s25, 0
        %s575 = scalar_select %p574, %s25, 0
        %s576 = sadd.s32 %s575, %s573
        %s577 = scalar_lea.vmem %s5, %s576
        // Predicated region
        $region53: #{tpu_custom_call.1} parent=39 // pred_check
          %p578 = pneg %p188
        $region54: #{tpu_custom_call.1} parent=39 // pred_check_branch
          %580 = sbr.rel (%p578) target = $region56
        $region55: #{tpu_custom_call.1} parent=39 // pred_region
          _
        $region56: #{tpu_custom_call.1} parent=39 // pred_fallthru
          _
      $region40: #{tpu_custom_call.1} parent=5 // pred_fallthru
        _
      %p581 = scmp.le.s32.totalorder 2, %s15
      // Predicated region
      $region57: #{tpu_custom_call.1} parent=5 // pred_check
        %p582 = pneg %p581
      $region58: #{tpu_custom_call.1} parent=5 // pred_check_branch
        %584 = sbr.rel (%p582) target = $region60
      $region59: #{tpu_custom_call.1} parent=5 // pred_region
        %s585 = ssub.s32 %s15, 2
        // Predicated region
        $region61: #{tpu_custom_call.1} parent=59 // pred_check
          %p586 = pneg %p194
        $region62: #{tpu_custom_call.1} parent=59 // pred_check_branch
          %588 = sbr.rel (%p586) target = $region64
        $region63: #{tpu_custom_call.1} parent=59 // pred_region
          %p589 = scmp.lt.s32.totalorder %s26, 1
          %s590 = scalar_select %p589, %s26, 1
          %p591 = scmp.lt.s32.totalorder %s27, 0
          %s592 = scalar_select %p591, %s27, 0
          %s593 = sadd.s32 %s592, %s590
          %s594 = scalar_lea.vmem %s5, %s593
        $region64: #{tpu_custom_call.1} parent=59 // pred_fallthru
          _
      $region60: #{tpu_custom_call.1} parent=5 // pred_fallthru
        _
    $region6: #{tpu_custom_call.1} parent=1 // loop_footer
      %s19 = sadd.s32 1, %s15
    $region7: #{tpu_custom_call.1} parent=1 // loop_footer_branch
      %14 = sbr.rel target = $region3
    $region8: #{tpu_custom_call.1} parent=1 // loop_exit
      _
    %595 = vsyncpa [#allocation3], 1
    %s596 = scalar_lea.sflag [#allocation3], 1
    %597 = vsyncpa %s596, 1
    %598 = vsyncpa [#allocation5], 1
    %s599 = scalar_lea.sflag [#allocation5], 1
    %600 = vsyncpa %s599, 1

</llo_original>
